<compile_context>
chip_gen: v6e
topology: v6e:2x2x1
jax: 0.10.0
libtpu: 0.0.40
codegen_flags: <defaults>
</compile_context>

<pallas_src>
import functools

import jax
import jax.numpy as jnp
from jax import lax
from jax.experimental import pallas as pl
from jax.experimental.pallas import tpu as pltpu


def _bottleneck_kernel(dilation, B, H, W,
                       x_ref, w1_ref, s1_ref, b1_ref,
                       w2_ref, s2_ref, b2_ref,
                       w3_ref, s3_ref, b3_ref,
                       o_ref):
    d = dilation
    P = w1_ref.shape[-1]
    mm_dtype = w1_ref.dtype
    rows = B * H * W

    x = x_ref[...].astype(jnp.float32)                        # (rows, Cin)

    # ---- conv1 (1x1) + bn1 + relu ----
    t1 = jnp.dot(x.astype(mm_dtype), w1_ref[...],
                 preferred_element_type=jnp.float32)
    t1 = jnp.maximum(t1 * s1_ref[...] + b1_ref[...], 0.0)     # (rows, P) f32

    # ---- conv2 (3x3, dilation=d, padding=d) + bn2 + relu ----
    # Zero-pad in registers (no VMEM scratch, no per-step zero fill of a
    # scratch buffer), slice the 9 dilated taps, concatenate along the
    # contraction dim and run a single im2col matmul.
    t1_img = t1.reshape(B, H, W, P)
    zh = jnp.zeros((B, d, W, P), jnp.float32)
    padded = jnp.concatenate([zh, t1_img, zh], axis=1)         # (B, H+2d, W, P)
    zw = jnp.zeros((B, H + 2 * d, d, P), jnp.float32)
    padded = jnp.concatenate([zw, padded, zw], axis=2)         # (B, H+2d, W+2d, P)
    taps = [padded[:, kh * d:kh * d + H, kw * d:kw * d + W, :]
            for kh in range(3) for kw in range(3)]
    col = jnp.concatenate(taps, axis=-1).reshape(rows, 9 * P)  # (rows, 9P)
    t2 = jnp.dot(col.astype(mm_dtype), w2_ref[...],
                 preferred_element_type=jnp.float32)
    t2 = jnp.maximum(t2 * s2_ref[...] + b2_ref[...], 0.0)      # (rows, P)

    # ---- conv3 (1x1) + bn3 + residual add + relu ----
    t3 = jnp.dot(t2.astype(mm_dtype), w3_ref[...],
                 preferred_element_type=jnp.float32)
    t3 = t3 * s3_ref[...] + b3_ref[...]
    o_ref[...] = jnp.maximum(t3 + x, 0.0).astype(o_ref.dtype)  # Cin == Cout


def atrous_bottleneck(x_nhwc, params, dilation, *,
                      compute_dtype=jnp.float32, batch_block=None):
    """x_nhwc: (N, H, W, Cin) float32. Returns (N, H, W, Cin)."""
    N, H, W, Cin = x_nhwc.shape
    w1, s1, b1, w2, s2, b2, w3, s3, b3 = params
    P = w1.shape[1]
    Cout = w3.shape[1]
    assert Cout == Cin, "identity add requires inplanes == planes * 4"

    if batch_block is None:
        batch_block = N                      # tiny config: one grid step total
    assert N % batch_block == 0
    grid = (N // batch_block,)
    rows_blk = batch_block * H * W

    # Fold batch+space into the matmul row dim (free reshape: NHWC is already
    # channels-minor); fold the 3x3 HWIO weight into (9P, P) once, and cast
    # matmul operands to the compute dtype (bf16 MXU path optional).
    cd = compute_dtype
    x2d = x_nhwc.reshape(N * H * W, Cin)
    w2_mat = w2.reshape(9 * P, P)

    kernel = functools.partial(_bottleneck_kernel, dilation, batch_block, H, W)
    wspec = lambda shape: pl.BlockSpec(shape, lambda g: (0, 0))

    out2d = pl.pallas_call(
        kernel,
        out_shape=jax.ShapeDtypeStruct((N * H * W, Cout), x_nhwc.dtype),
        grid=grid,
        in_specs=[
            pl.BlockSpec((rows_blk, Cin), lambda g: (g, 0)),
            wspec((Cin, P)), wspec((1, P)), wspec((1, P)),
            wspec((9 * P, P)), wspec((1, P)), wspec((1, P)),
            wspec((P, Cout)), wspec((1, Cout)), wspec((1, Cout)),
        ],
        out_specs=pl.BlockSpec((rows_blk, Cout), lambda g: (g, 0)),
        compiler_params=pltpu.CompilerParams(
            dimension_semantics=("parallel",),          # batch is independent
            vmem_limit_bytes=64 * 1024 * 1024),          # raise scoped VMEM
    )(x2d, w1.astype(cd), s1, b1, w2_mat.astype(cd), s2, b2,
      w3.astype(cd), s3, b3)
    return out2d.reshape(N, H, W, Cout)


def _fold_bn(gamma, beta, rmean, rvar, eps=1e-5):
    scale = gamma / jnp.sqrt(rvar + eps)
    bias = beta - rmean * scale
    return scale[None, :], bias[None, :]


def _reference(x_nhwc, params, dilation):
    """Pure-JAX reference of the same forward pass (eval-mode BN)."""
    w1, s1, b1, w2, s2, b2, w3, s3, b3 = params
    dn = ('NHWC', 'HWIO', 'NHWC')
    t = lax.conv_general_dilated(x_nhwc, w1[None, None], (1, 1), 'VALID',
                                 dimension_numbers=dn)
    t = jnp.maximum(t * s1[0] + b1[0], 0.0)
    t = lax.conv_general_dilated(t, w2, (1, 1), [(dilation, dilation)] * 2,
                                 rhs_dilation=(dilation, dilation),
                                 dimension_numbers=dn)
    t = jnp.maximum(t * s2[0] + b2[0], 0.0)
    t = lax.conv_general_dilated(t, w3[None, None], (1, 1), 'VALID',
                                 dimension_numbers=dn)
    t = t * s3[0] + b3[0]
    return jnp.maximum(t + x_nhwc, 0.0)


if __name__ == "__main__":
    # Module config: inplanes=16, planes=4 (expansion=4 -> out channels 16),
    # stride=1, downsample=None, dilation=2.  Input NCHW = (2, 16, 8, 8).
    N, inplanes, H, W = 2, 16, 8, 8
    planes, dilation = 4, 2
    outplanes = planes * 4

    key = jax.random.PRNGKey(0)
    ks = jax.random.split(key, 16)

    # PyTorch conv weight layouts -> matmul / HWIO layouts.
    w1_t = jax.random.normal(ks[0], (planes, inplanes, 1, 1), jnp.float32) * 0.1
    w2_t = jax.random.normal(ks[1], (planes, planes, 3, 3), jnp.float32) * 0.1
    w3_t = jax.random.normal(ks[2], (outplanes, planes, 1, 1), jnp.float32) * 0.1
    w1 = jnp.transpose(w1_t[:, :, 0, 0], (1, 0))            # (Cin, P)
    w2 = jnp.transpose(w2_t, (2, 3, 1, 0))                  # (3, 3, P, P) HWIO
    w3 = jnp.transpose(w3_t[:, :, 0, 0], (1, 0))            # (P, Cout)

    def bn_params(k, c):
        k1, k2, k3, k4 = jax.random.split(k, 4)
        gamma = 1.0 + 0.1 * jax.random.normal(k1, (c,), jnp.float32)
        beta = 0.1 * jax.random.normal(k2, (c,), jnp.float32)
        rmean = 0.1 * jax.random.normal(k3, (c,), jnp.float32)
        rvar = jnp.abs(1.0 + 0.1 * jax.random.normal(k4, (c,), jnp.float32))
        return _fold_bn(gamma, beta, rmean, rvar)

    s1, b1 = bn_params(ks[3], planes)
    s2, b2 = bn_params(ks[4], planes)
    s3, b3 = bn_params(ks[5], outplanes)
    params = (w1, s1, b1, w2, s2, b2, w3, s3, b3)

    x_nchw = jax.random.normal(ks[6], (N, inplanes, H, W), jnp.float32)
    x_nhwc = jnp.transpose(x_nchw, (0, 2, 3, 1))             # NCHW -> NHWC

    ref = _reference(x_nhwc, params, dilation)

    # f32 matmul path (tight tolerance).
    out = atrous_bottleneck(x_nhwc, params, dilation)
    out = jax.block_until_ready(out)
    assert jnp.allclose(out, ref, atol=2e-4, rtol=2e-4), "f32 mismatch vs ref"

    # bf16 MXU path (f32 accumulation), looser tolerance.
    out_bf16 = atrous_bottleneck(x_nhwc, params, dilation,
                                 compute_dtype=jnp.bfloat16)
    out_bf16 = jax.block_until_ready(out_bf16)
    assert jnp.allclose(out_bf16, ref, atol=5e-2, rtol=5e-2), \
        "bf16 mismatch vs ref"

    print("KERNEL_OK")
</pallas_src>

<mosaic_0001>
module attributes {stable_mosaic.version = 11 : i64} {
  func.func @_bottleneck_kernel(%arg0: i32, %arg1: memref<128x16xf32, #tpu.memory_space<vmem>>, %arg2: memref<16x4xf32, #tpu.memory_space<vmem>>, %arg3: memref<1x4xf32, #tpu.memory_space<vmem>>, %arg4: memref<1x4xf32, #tpu.memory_space<vmem>>, %arg5: memref<36x4xf32, #tpu.memory_space<vmem>>, %arg6: memref<1x4xf32, #tpu.memory_space<vmem>>, %arg7: memref<1x4xf32, #tpu.memory_space<vmem>>, %arg8: memref<4x16xf32, #tpu.memory_space<vmem>>, %arg9: memref<1x16xf32, #tpu.memory_space<vmem>>, %arg10: memref<1x16xf32, #tpu.memory_space<vmem>>, %arg11: memref<128x16xf32, #tpu.memory_space<vmem>>) attributes {dimension_semantics = [#tpu.dimension_semantics<parallel>], iteration_bounds = array<i64: 1>, scalar_prefetch = 0 : i64, scratch_operands = 0 : i64, tpu.core_type = #tpu.core_type<tc>, window_params = [{transform_indices = @transform_0, window_bounds = array<i64: 128, 16>}, {pipeline_mode = #tpu.pipeline_mode<synchronous>, transform_indices = @transform_1, window_bounds = array<i64: 16, 4>}, {pipeline_mode = #tpu.pipeline_mode<synchronous>, transform_indices = @transform_2, window_bounds = array<i64: 1, 4>}, {pipeline_mode = #tpu.pipeline_mode<synchronous>, transform_indices = @transform_3, window_bounds = array<i64: 1, 4>}, {pipeline_mode = #tpu.pipeline_mode<synchronous>, transform_indices = @transform_4, window_bounds = array<i64: 36, 4>}, {pipeline_mode = #tpu.pipeline_mode<synchronous>, transform_indices = @transform_5, window_bounds = array<i64: 1, 4>}, {pipeline_mode = #tpu.pipeline_mode<synchronous>, transform_indices = @transform_6, window_bounds = array<i64: 1, 4>}, {pipeline_mode = #tpu.pipeline_mode<synchronous>, transform_indices = @transform_7, window_bounds = array<i64: 4, 16>}, {pipeline_mode = #tpu.pipeline_mode<synchronous>, transform_indices = @transform_8, window_bounds = array<i64: 1, 16>}, {pipeline_mode = #tpu.pipeline_mode<synchronous>, transform_indices = @transform_9, window_bounds = array<i64: 1, 16>}, {transform_indices = @transform_10, window_bounds = array<i64: 128, 16>}]} {
    %c0 = arith.constant 0 : index
    %c0_0 = arith.constant 0 : index
    %0 = vector.load %arg1[%c0, %c0_0] : memref<128x16xf32, #tpu.memory_space<vmem>>, vector<128x16xf32>
    %c0_1 = arith.constant 0 : index
    %c0_2 = arith.constant 0 : index
    %1 = vector.load %arg2[%c0_1, %c0_2] : memref<16x4xf32, #tpu.memory_space<vmem>>, vector<16x4xf32>
    %cst = arith.constant dense<0.000000e+00> : vector<128x4xf32>
    %2 = tpu.matmul %0, %1, %cst {dimension_numbers = #tpu.dot_dimension_numbers<[1], [0], [0], [1], [0, 0, 1, 1], [], []>} : vector<128x16xf32>, vector<16x4xf32>, vector<128x4xf32> -> vector<128x4xf32>
    %c0_3 = arith.constant 0 : index
    %c0_4 = arith.constant 0 : index
    %3 = vector.load %arg3[%c0_3, %c0_4] : memref<1x4xf32, #tpu.memory_space<vmem>>, vector<1x4xf32>
    %4 = vector.broadcast %3 : vector<1x4xf32> to vector<128x4xf32>
    %5 = arith.mulf %2, %4 : vector<128x4xf32>
    %c0_5 = arith.constant 0 : index
    %c0_6 = arith.constant 0 : index
    %6 = vector.load %arg4[%c0_5, %c0_6] : memref<1x4xf32, #tpu.memory_space<vmem>>, vector<1x4xf32>
    %7 = vector.broadcast %6 : vector<1x4xf32> to vector<128x4xf32>
    %8 = arith.addf %5, %7 : vector<128x4xf32>
    %cst_7 = arith.constant 0.000000e+00 : f32
    %9 = vector.broadcast %cst_7 : f32 to vector<128x4xf32>
    %10 = arith.maximumf %8, %9 : vector<128x4xf32>
    %11 = vector.shape_cast %10 : vector<128x4xf32> to vector<2x8x8x4xf32>
    %cst_8 = arith.constant 0.000000e+00 : f32
    %12 = vector.broadcast %cst_8 : f32 to vector<2x2x8x4xf32>
    %13 = tpu.concatenate %12, %11, %12 in 1 : vector<2x2x8x4xf32>, vector<2x8x8x4xf32>, vector<2x2x8x4xf32> -> vector<2x12x8x4xf32>
    %cst_9 = arith.constant 0.000000e+00 : f32
    %14 = vector.broadcast %cst_9 : f32 to vector<2x12x2x4xf32>
    %15 = tpu.concatenate %14, %13, %14 in 2 : vector<2x12x2x4xf32>, vector<2x12x8x4xf32>, vector<2x12x2x4xf32> -> vector<2x12x12x4xf32>
    %16 = vector.extract_strided_slice %15 {offsets = [0, 0, 0, 0], sizes = [2, 8, 8, 4], strides = [1, 1, 1, 1]} : vector<2x12x12x4xf32> to vector<2x8x8x4xf32>
    %17 = vector.extract_strided_slice %15 {offsets = [0, 0, 2, 0], sizes = [2, 8, 8, 4], strides = [1, 1, 1, 1]} : vector<2x12x12x4xf32> to vector<2x8x8x4xf32>
    %18 = vector.extract_strided_slice %15 {offsets = [0, 0, 4, 0], sizes = [2, 8, 8, 4], strides = [1, 1, 1, 1]} : vector<2x12x12x4xf32> to vector<2x8x8x4xf32>
    %19 = vector.extract_strided_slice %15 {offsets = [0, 2, 0, 0], sizes = [2, 8, 8, 4], strides = [1, 1, 1, 1]} : vector<2x12x12x4xf32> to vector<2x8x8x4xf32>
    %20 = vector.extract_strided_slice %15 {offsets = [0, 2, 2, 0], sizes = [2, 8, 8, 4], strides = [1, 1, 1, 1]} : vector<2x12x12x4xf32> to vector<2x8x8x4xf32>
    %21 = vector.extract_strided_slice %15 {offsets = [0, 2, 4, 0], sizes = [2, 8, 8, 4], strides = [1, 1, 1, 1]} : vector<2x12x12x4xf32> to vector<2x8x8x4xf32>
    %22 = vector.extract_strided_slice %15 {offsets = [0, 4, 0, 0], sizes = [2, 8, 8, 4], strides = [1, 1, 1, 1]} : vector<2x12x12x4xf32> to vector<2x8x8x4xf32>
    %23 = vector.extract_strided_slice %15 {offsets = [0, 4, 2, 0], sizes = [2, 8, 8, 4], strides = [1, 1, 1, 1]} : vector<2x12x12x4xf32> to vector<2x8x8x4xf32>
    %24 = vector.extract_strided_slice %15 {offsets = [0, 4, 4, 0], sizes = [2, 8, 8, 4], strides = [1, 1, 1, 1]} : vector<2x12x12x4xf32> to vector<2x8x8x4xf32>
    %25 = tpu.concatenate %16, %17, %18, %19, %20, %21, %22, %23, %24 in 3 : vector<2x8x8x4xf32>, vector<2x8x8x4xf32>, vector<2x8x8x4xf32>, vector<2x8x8x4xf32>, vector<2x8x8x4xf32>, vector<2x8x8x4xf32>, vector<2x8x8x4xf32>, vector<2x8x8x4xf32>, vector<2x8x8x4xf32> -> vector<2x8x8x36xf32>
    %26 = vector.shape_cast %25 : vector<2x8x8x36xf32> to vector<128x36xf32>
    %c0_10 = arith.constant 0 : index
    %c0_11 = arith.constant 0 : index
    %27 = vector.load %arg5[%c0_10, %c0_11] : memref<36x4xf32, #tpu.memory_space<vmem>>, vector<36x4xf32>
    %cst_12 = arith.constant dense<0.000000e+00> : vector<128x4xf32>
    %28 = tpu.matmul %26, %27, %cst_12 {dimension_numbers = #tpu.dot_dimension_numbers<[1], [0], [0], [1], [0, 0, 1, 1], [], []>} : vector<128x36xf32>, vector<36x4xf32>, vector<128x4xf32> -> vector<128x4xf32>
    %c0_13 = arith.constant 0 : index
    %c0_14 = arith.constant 0 : index
    %29 = vector.load %arg6[%c0_13, %c0_14] : memref<1x4xf32, #tpu.memory_space<vmem>>, vector<1x4xf32>
    %30 = vector.broadcast %29 : vector<1x4xf32> to vector<128x4xf32>
    %31 = arith.mulf %28, %30 : vector<128x4xf32>
    %c0_15 = arith.constant 0 : index
    %c0_16 = arith.constant 0 : index
    %32 = vector.load %arg7[%c0_15, %c0_16] : memref<1x4xf32, #tpu.memory_space<vmem>>, vector<1x4xf32>
    %33 = vector.broadcast %32 : vector<1x4xf32> to vector<128x4xf32>
    %34 = arith.addf %31, %33 : vector<128x4xf32>
    %cst_17 = arith.constant 0.000000e+00 : f32
    %35 = vector.broadcast %cst_17 : f32 to vector<128x4xf32>
    %36 = arith.maximumf %34, %35 : vector<128x4xf32>
    %c0_18 = arith.constant 0 : index
    %c0_19 = arith.constant 0 : index
    %37 = vector.load %arg8[%c0_18, %c0_19] : memref<4x16xf32, #tpu.memory_space<vmem>>, vector<4x16xf32>
    %cst_20 = arith.constant dense<0.000000e+00> : vector<128x16xf32>
    %38 = tpu.matmul %36, %37, %cst_20 {dimension_numbers = #tpu.dot_dimension_numbers<[1], [0], [0], [1], [0, 0, 1, 1], [], []>} : vector<128x4xf32>, vector<4x16xf32>, vector<128x16xf32> -> vector<128x16xf32>
    %c0_21 = arith.constant 0 : index
    %c0_22 = arith.constant 0 : index
    %39 = vector.load %arg9[%c0_21, %c0_22] : memref<1x16xf32, #tpu.memory_space<vmem>>, vector<1x16xf32>
    %40 = vector.broadcast %39 : vector<1x16xf32> to vector<128x16xf32>
    %41 = arith.mulf %38, %40 : vector<128x16xf32>
    %c0_23 = arith.constant 0 : index
    %c0_24 = arith.constant 0 : index
    %42 = vector.load %arg10[%c0_23, %c0_24] : memref<1x16xf32, #tpu.memory_space<vmem>>, vector<1x16xf32>
    %43 = vector.broadcast %42 : vector<1x16xf32> to vector<128x16xf32>
    %44 = arith.addf %41, %43 : vector<128x16xf32>
    %45 = arith.addf %44, %0 : vector<128x16xf32>
    %cst_25 = arith.constant 0.000000e+00 : f32
    %46 = vector.broadcast %cst_25 : f32 to vector<128x16xf32>
    %47 = arith.maximumf %45, %46 : vector<128x16xf32>
    %c0_26 = arith.constant 0 : index
    %c0_27 = arith.constant 0 : index
    %48 = vector.load %arg11[%c0_26, %c0_27] : memref<128x16xf32, #tpu.memory_space<vmem>>, vector<128x16xf32>
    tpu.vector_store %arg11[%c0_26, %c0_27], %47 {strides = array<i32>} : memref<128x16xf32, #tpu.memory_space<vmem>>, vector<128x16xf32>,
    return
  }
  func.func @transform_0(%arg0: i32) -> (i32, i32) {
    %c0_i32 = arith.constant 0 : i32
    %c0_i32_0 = arith.constant 0 : i32
    return %arg0, %c0_i32 : i32, i32
  }
  func.func @transform_1(%arg0: i32) -> (i32, i32) {
    %c0_i32 = arith.constant 0 : i32
    %c0_i32_0 = arith.constant 0 : i32
    %c0_i32_1 = arith.constant 0 : i32
    return %c0_i32, %c0_i32_0 : i32, i32
  }
  func.func @transform_2(%arg0: i32) -> (i32, i32) {
    %c0_i32 = arith.constant 0 : i32
    %c0_i32_0 = arith.constant 0 : i32
    %c0_i32_1 = arith.constant 0 : i32
    return %c0_i32, %c0_i32_0 : i32, i32
  }
  func.func @transform_3(%arg0: i32) -> (i32, i32) {
    %c0_i32 = arith.constant 0 : i32
    %c0_i32_0 = arith.constant 0 : i32
    %c0_i32_1 = arith.constant 0 : i32
    return %c0_i32, %c0_i32_0 : i32, i32
  }
  func.func @transform_4(%arg0: i32) -> (i32, i32) {
    %c0_i32 = arith.constant 0 : i32
    %c0_i32_0 = arith.constant 0 : i32
    %c0_i32_1 = arith.constant 0 : i32
    return %c0_i32, %c0_i32_0 : i32, i32
  }
  func.func @transform_5(%arg0: i32) -> (i32, i32) {
    %c0_i32 = arith.constant 0 : i32
    %c0_i32_0 = arith.constant 0 : i32
    %c0_i32_1 = arith.constant 0 : i32
    return %c0_i32, %c0_i32_0 : i32, i32
  }
  func.func @transform_6(%arg0: i32) -> (i32, i32) {
    %c0_i32 = arith.constant 0 : i32
    %c0_i32_0 = arith.constant 0 : i32
    %c0_i32_1 = arith.constant 0 : i32
    return %c0_i32, %c0_i32_0 : i32, i32
  }
  func.func @transform_7(%arg0: i32) -> (i32, i32) {
    %c0_i32 = arith.constant 0 : i32
    %c0_i32_0 = arith.constant 0 : i32
    %c0_i32_1 = arith.constant 0 : i32
    return %c0_i32, %c0_i32_0 : i32, i32
  }
  func.func @transform_8(%arg0: i32) -> (i32, i32) {
    %c0_i32 = arith.constant 0 : i32
    %c0_i32_0 = arith.constant 0 : i32
    %c0_i32_1 = arith.constant 0 : i32
    return %c0_i32, %c0_i32_0 : i32, i32
  }
  func.func @transform_9(%arg0: i32) -> (i32, i32) {
    %c0_i32 = arith.constant 0 : i32
    %c0_i32_0 = arith.constant 0 : i32
    %c0_i32_1 = arith.constant 0 : i32
    return %c0_i32, %c0_i32_0 : i32, i32
  }
  func.func @transform_10(%arg0: i32) -> (i32, i32) {
    %c0_i32 = arith.constant 0 : i32
    %c0_i32_0 = arith.constant 0 : i32
    return %arg0, %c0_i32 : i32, i32
  }
}

</mosaic_0001>

<llo_original>
// kernel: tpu_custom_call.1
$region0: #{tpu_custom_call.1}
  #allocation0 [shape = 'u32[]', space=smem, size = 0x4, offset = 0x4, fixed_abs, tag = 'smem constant byte address 0x4 - core index']
  #allocation1 [shape = 'u32[144,128]{1,0:T(1,128)}', space=vmem, size = 0x12000, scoped, tag = 'internal scratch']
  %s0 = inlined_call_operand.vmem [shape: f32[128,16], index: 0, kind: input, shape index: {}]
  %s1 = inlined_call_operand.vmem [shape: f32[16,4], index: 1, kind: input, shape index: {}]
  %s2 = inlined_call_operand.vmem [shape: f32[1,4], index: 2, kind: input, shape index: {}]
  %s3 = inlined_call_operand.vmem [shape: f32[1,4], index: 3, kind: input, shape index: {}]
  %s4 = inlined_call_operand.vmem [shape: f32[36,4], index: 4, kind: input, shape index: {}]
  %s5 = inlined_call_operand.vmem [shape: f32[1,4], index: 5, kind: input, shape index: {}]
  %s6 = inlined_call_operand.vmem [shape: f32[1,4], index: 6, kind: input, shape index: {}]
  %s7 = inlined_call_operand.vmem [shape: f32[4,16], index: 7, kind: input, shape index: {}]
  %s8 = inlined_call_operand.vmem [shape: f32[1,16], index: 8, kind: input, shape index: {}]
  %s9 = inlined_call_operand.vmem [shape: f32[1,16], index: 9, kind: input, shape index: {}]
  %s10 = inlined_call_operand.vmem [shape: f32[128,16], index: 10, kind: output, shape index: {}]
  %s11 = sld [smem:[#allocation0]]
  $region50: #{tpu_custom_call.1} parent=0
    _
  %s13 = ssub.s32 1, %s11
  %s14 = scalar_select 0, %s13, %s11
  // Predicated region
  $region2: #{tpu_custom_call.1} parent=0 // pred_check
    _
  $region3: #{tpu_custom_call.1} parent=0 // pred_check_branch
    %16 = sbr.rel (0) target = $region5
  $region4: #{tpu_custom_call.1} parent=0 // pred_region
    _
  $region5: #{tpu_custom_call.1} parent=0 // pred_fallthru
    _
  // Predicated region
  $region6: #{tpu_custom_call.1} parent=0 // pred_check
    _
  $region7: #{tpu_custom_call.1} parent=0 // pred_check_branch
    %18 = sbr.rel (0) target = $region9
  $region8: #{tpu_custom_call.1} parent=0 // pred_region
    _
  $region9: #{tpu_custom_call.1} parent=0 // pred_fallthru
    _
  // Predicated region
  $region10: #{tpu_custom_call.1} parent=0 // pred_check
    _
  $region11: #{tpu_custom_call.1} parent=0 // pred_check_branch
    %20 = sbr.rel (0) target = $region13
  $region12: #{tpu_custom_call.1} parent=0 // pred_region
    _
  $region13: #{tpu_custom_call.1} parent=0 // pred_fallthru
    _
  // Predicated region
  $region14: #{tpu_custom_call.1} parent=0 // pred_check
    _
  $region15: #{tpu_custom_call.1} parent=0 // pred_check_branch
    %22 = sbr.rel (0) target = $region17
  $region16: #{tpu_custom_call.1} parent=0 // pred_region
    _
  $region17: #{tpu_custom_call.1} parent=0 // pred_fallthru
    _
  // Predicated region
  $region18: #{tpu_custom_call.1} parent=0 // pred_check
    _
  $region19: #{tpu_custom_call.1} parent=0 // pred_check_branch
    %24 = sbr.rel (0) target = $region21
  $region20: #{tpu_custom_call.1} parent=0 // pred_region
    _
  $region21: #{tpu_custom_call.1} parent=0 // pred_fallthru
    _
  // Predicated region
  $region22: #{tpu_custom_call.1} parent=0 // pred_check
    _
  $region23: #{tpu_custom_call.1} parent=0 // pred_check_branch
    %26 = sbr.rel (0) target = $region25
  $region24: #{tpu_custom_call.1} parent=0 // pred_region
    _
  $region25: #{tpu_custom_call.1} parent=0 // pred_fallthru
    _
  // Predicated region
  $region26: #{tpu_custom_call.1} parent=0 // pred_check
    _
  $region27: #{tpu_custom_call.1} parent=0 // pred_check_branch
    %28 = sbr.rel (0) target = $region29
  $region28: #{tpu_custom_call.1} parent=0 // pred_region
    _
  $region29: #{tpu_custom_call.1} parent=0 // pred_fallthru
    _
  // Predicated region
  $region30: #{tpu_custom_call.1} parent=0 // pred_check
    _
  $region31: #{tpu_custom_call.1} parent=0 // pred_check_branch
    %30 = sbr.rel (0) target = $region33
  $region32: #{tpu_custom_call.1} parent=0 // pred_region
    _
  $region33: #{tpu_custom_call.1} parent=0 // pred_fallthru
    _
  // Predicated region
  $region34: #{tpu_custom_call.1} parent=0 // pred_check
    _
  $region35: #{tpu_custom_call.1} parent=0 // pred_check_branch
    %32 = sbr.rel (0) target = $region37
  $region36: #{tpu_custom_call.1} parent=0 // pred_region
    _
  $region37: #{tpu_custom_call.1} parent=0 // pred_fallthru
    _
  // Predicated region
  $region38: #{tpu_custom_call.1} parent=0 // pred_check
    _
  $region39: #{tpu_custom_call.1} parent=0 // pred_check_branch
    %34 = sbr.rel (0) target = $region41
  $region40: #{tpu_custom_call.1} parent=0 // pred_region
    _
  $region41: #{tpu_custom_call.1} parent=0 // pred_fallthru
    _
  %v35 = vld [vmem:[%s0] sm:$0xff]
  %v36 = vld [vmem:[%s0 + $0x8] sm:$0xff]
  %v37 = vld [vmem:[%s0 + $0x10] sm:$0xff]
  %v38 = vld [vmem:[%s0 + $0x18] sm:$0xff]
  %v39 = vld [vmem:[%s0 + $0x20] sm:$0xff]
  %v40 = vld [vmem:[%s0 + $0x28] sm:$0xff]
  %v41 = vld [vmem:[%s0 + $0x30] sm:$0xff]
  %v42 = vld [vmem:[%s0 + $0x38] sm:$0xff]
  %v43 = vld [vmem:[%s0 + $0x40] sm:$0xff]
  %v44 = vld [vmem:[%s0 + $0x48] sm:$0xff]
  %v45 = vld [vmem:[%s0 + $0x50] sm:$0xff]
  %v46 = vld [vmem:[%s0 + $0x58] sm:$0xff]
  %v47 = vld [vmem:[%s0 + $0x60] sm:$0xff]
  %v48 = vld [vmem:[%s0 + $0x68] sm:$0xff]
  %v49 = vld [vmem:[%s0 + $0x70] sm:$0xff]
  %v50 = vld [vmem:[%s0 + $0x78] sm:$0xff]
  %v51 = vld [vmem:[%s1] sm:$0xff]
  %v52 = vld [vmem:[%s1 + $0x8] sm:$0xff]
  %vm53 = vcmask 130048
  %v55 = vsel %vm53, %v35, 0
  %v58 = vsel %vm53, %v36, 0
  %v61 = vsel %vm53, %v37, 0
  %v64 = vsel %vm53, %v38, 0
  %v67 = vsel %vm53, %v39, 0
  %v70 = vsel %vm53, %v40, 0
  %v73 = vsel %vm53, %v41, 0
  %v76 = vsel %vm53, %v42, 0
  %v79 = vsel %vm53, %v43, 0
  %v82 = vsel %vm53, %v44, 0
  %v85 = vsel %vm53, %v45, 0
  %v88 = vsel %vm53, %v46, 0
  %v91 = vsel %vm53, %v47, 0
  %v94 = vsel %vm53, %v48, 0
  %v97 = vsel %vm53, %v49, 0
  %v100 = vsel %vm53, %v50, 0
  %102 = vmatprep.subr.mxu0 0.0
  %103 = vmatpush1.msra.mxu0 0.0
  %104 = vmatprep.subr.mxu0 0.0
  %105 = vmatpush1.msra.mxu0 0.0
  %106 = vmatprep.subr.mxu0 0.0
  %107 = vmatpush1.msra.mxu0 0.0
  %108 = vmatprep.subr.mxu0 0.0
  %109 = vmatpush1.msra.mxu0 0.0
  %110 = vmatprep.subr.mxu0 0.0
  %111 = vmatpush1.msra.mxu0 0.0
  %112 = vmatprep.subr.mxu0 0.0
  %113 = vmatpush1.msra.mxu0 0.0
  %114 = vmatprep.subr.mxu0 0.0
  %115 = vmatpush1.msra.mxu0 0.0
  %116 = vmatprep.subr.mxu0 0.0
  %117 = vmatpush1.msra.mxu0 0.0
  %118 = vmatprep.subr.mxu0 0.0
  %119 = vmatpush1.msra.mxu0 0.0
  %120 = vmatprep.subr.mxu0 0.0
  %121 = vmatpush1.msra.mxu0 0.0
  %122 = vmatprep.subr.mxu0 0.0
  %123 = vmatpush1.msra.mxu0 0.0
  %124 = vmatprep.subr.mxu0 0.0
  %125 = vmatpush1.msra.mxu0 0.0
  %126 = vmatprep.subr.mxu0 0.0
  %127 = vmatpush1.msra.mxu0 0.0
  %128 = vmatprep.subr.mxu0 0.0
  %129 = vmatpush1.msra.mxu0 0.0
  %130 = vmatprep.subr.mxu0 0.0
  %131 = vmatpush1.msra.mxu0 %v52
  %132 = vmatprep.subr.mxu0 0.0
  %133 = vmatpush1.msra.mxu0 %v51
  %134 = vmatprep.subr.mxu0 0.0
  %135 = vmatpush2.msra.mxu0 0.0
  %136 = vmatprep.subr.mxu0 0.0
  %137 = vmatpush2.msra.mxu0 0.0
  %138 = vmatprep.subr.mxu0 0.0
  %139 = vmatpush2.msra.mxu0 0.0
  %140 = vmatprep.subr.mxu0 0.0
  %141 = vmatpush2.msra.mxu0 0.0
  %142 = vmatprep.subr.mxu0 0.0
  %143 = vmatpush2.msra.mxu0 0.0
  %144 = vmatprep.subr.mxu0 0.0
  %145 = vmatpush2.msra.mxu0 0.0
  %146 = vmatprep.subr.mxu0 0.0
  %147 = vmatpush2.msra.mxu0 0.0
  %148 = vmatprep.subr.mxu0 0.0
  %149 = vmatpush2.msra.mxu0 0.0
  %150 = vmatprep.subr.mxu0 0.0
  %151 = vmatpush2.msra.mxu0 0.0
  %152 = vmatprep.subr.mxu0 0.0
  %153 = vmatpush2.msra.mxu0 0.0
  %154 = vmatprep.subr.mxu0 0.0
  %155 = vmatpush2.msra.mxu0 0.0
  %156 = vmatprep.subr.mxu0 0.0
  %157 = vmatpush2.msra.mxu0 0.0
  %158 = vmatprep.subr.mxu0 0.0
  %159 = vmatpush2.msra.mxu0 0.0
  %160 = vmatprep.subr.mxu0 0.0
  %161 = vmatpush2.msra.mxu0 0.0
  %162 = vmatprep.subr.mxu0 0.0
  %163 = vmatpush2.msra.mxu0 0.0
  %164 = vmatprep.subr.mxu0 0.0
  %165 = vmatpush2.msra.mxu0 0.0
  %166 = vmatprep.mubr.f32.mxu0 0.0
  %167 = vmatmul.mubr.f32.gmra.mxu0 %v55
  %v168 = vpop.f32.mrf.mxu0
  %v169 = vadd.f32 0.0, %v168
  %v170 = vpop.f32.mrf.mxu0
  %171 = vmatprep.mubr.f32.mxu0 0.0
  %172 = vmatmul.mubr.f32.gmra.mxu0 %v58
  %v173 = vpop.f32.mrf.mxu0
  %v174 = vadd.f32 0.0, %v173
  %v175 = vpop.f32.mrf.mxu0
  %176 = vmatprep.mubr.f32.mxu0 0.0
  %177 = vmatmul.mubr.f32.gmra.mxu0 %v61
  %v178 = vpop.f32.mrf.mxu0
  %v179 = vadd.f32 0.0, %v178
  %v180 = vpop.f32.mrf.mxu0
  %181 = vmatprep.mubr.f32.mxu0 0.0
  %182 = vmatmul.mubr.f32.gmra.mxu0 %v64
  %v183 = vpop.f32.mrf.mxu0
  %v184 = vadd.f32 0.0, %v183
  %v185 = vpop.f32.mrf.mxu0
  %186 = vmatprep.mubr.f32.mxu0 0.0
  %187 = vmatmul.mubr.f32.gmra.mxu0 %v67
  %v188 = vpop.f32.mrf.mxu0
  %v189 = vadd.f32 0.0, %v188
  %v190 = vpop.f32.mrf.mxu0
  %191 = vmatprep.mubr.f32.mxu0 0.0
  %192 = vmatmul.mubr.f32.gmra.mxu0 %v70
  %v193 = vpop.f32.mrf.mxu0
  %v194 = vadd.f32 0.0, %v193
  %v195 = vpop.f32.mrf.mxu0
  %196 = vmatprep.mubr.f32.mxu0 0.0
  %197 = vmatmul.mubr.f32.gmra.mxu0 %v73
  %v198 = vpop.f32.mrf.mxu0
  %v199 = vadd.f32 0.0, %v198
  %v200 = vpop.f32.mrf.mxu0
  %201 = vmatprep.mubr.f32.mxu0 0.0
  %202 = vmatmul.mubr.f32.gmra.mxu0 %v76
  %v203 = vpop.f32.mrf.mxu0
  %v204 = vadd.f32 0.0, %v203
  %v205 = vpop.f32.mrf.mxu0
  %206 = vmatprep.mubr.f32.mxu0 0.0
  %207 = vmatmul.mubr.f32.gmra.mxu0 %v79
  %v208 = vpop.f32.mrf.mxu0
  %v209 = vadd.f32 0.0, %v208
  %v210 = vpop.f32.mrf.mxu0
  %211 = vmatprep.mubr.f32.mxu0 0.0
  %212 = vmatmul.mubr.f32.gmra.mxu0 %v82
  %v213 = vpop.f32.mrf.mxu0
  %v214 = vadd.f32 0.0, %v213
  %v215 = vpop.f32.mrf.mxu0
  %216 = vmatprep.mubr.f32.mxu0 0.0
  %217 = vmatmul.mubr.f32.gmra.mxu0 %v85
  %v218 = vpop.f32.mrf.mxu0
  %v219 = vadd.f32 0.0, %v218
  %v220 = vpop.f32.mrf.mxu0
  %221 = vmatprep.mubr.f32.mxu0 0.0
  %222 = vmatmul.mubr.f32.gmra.mxu0 %v88
  %v223 = vpop.f32.mrf.mxu0
  %v224 = vadd.f32 0.0, %v223
  %v225 = vpop.f32.mrf.mxu0
  %226 = vmatprep.mubr.f32.mxu0 0.0
  %227 = vmatmul.mubr.f32.gmra.mxu0 %v91
  %v228 = vpop.f32.mrf.mxu0
  %v229 = vadd.f32 0.0, %v228
  %v230 = vpop.f32.mrf.mxu0
  %231 = vmatprep.mubr.f32.mxu0 0.0
  %232 = vmatmul.mubr.f32.gmra.mxu0 %v94
  %v233 = vpop.f32.mrf.mxu0
  %v234 = vadd.f32 0.0, %v233
  %v235 = vpop.f32.mrf.mxu0
  %236 = vmatprep.mubr.f32.mxu0 0.0
  %237 = vmatmul.mubr.f32.gmra.mxu0 %v97
  %v238 = vpop.f32.mrf.mxu0
  %v239 = vadd.f32 0.0, %v238
  %v240 = vpop.f32.mrf.mxu0
  %241 = vmatprep.mubr.f32.mxu0 0.0
  %242 = vmatmul.mubr.f32.gmra.mxu0 %v100
  %v243 = vpop.f32.mrf.mxu0
  %v244 = vadd.f32 0.0, %v243
  %v245 = vpop.f32.mrf.mxu0
  %246 = vdwg.mxu0
  %v247 = vld [vmem:[%s2] sm:$0x1]
  %v249 = vlaneseq
  %v250 = vshrl.u32 %v249, 7
  %v251 = vsub.s32 0, %v250
  %v252 = vrot.slane %v247, %v251
  %v254 = vmul.f32 %v169, %v252
  %v255 = vmul.f32 %v174, %v252
  %v256 = vmul.f32 %v179, %v252
  %v257 = vmul.f32 %v184, %v252
  %v258 = vmul.f32 %v189, %v252
  %v259 = vmul.f32 %v194, %v252
  %v260 = vmul.f32 %v199, %v252
  %v261 = vmul.f32 %v204, %v252
  %v262 = vmul.f32 %v209, %v252
  %v263 = vmul.f32 %v214, %v252
  %v264 = vmul.f32 %v219, %v252
  %v265 = vmul.f32 %v224, %v252
  %v266 = vmul.f32 %v229, %v252
  %v267 = vmul.f32 %v234, %v252
  %v268 = vmul.f32 %v239, %v252
  %v269 = vmul.f32 %v244, %v252
  %v270 = vld [vmem:[%s3] sm:$0x1]
  %v272 = vlaneseq
  %v273 = vshrl.u32 %v272, 7
  %v274 = vsub.s32 0, %v273
  %v275 = vrot.slane %v270, %v274
  %v277 = vadd.f32 %v254, %v275
  %v278 = vadd.f32 %v255, %v275
  %v279 = vadd.f32 %v256, %v275
  %v280 = vadd.f32 %v257, %v275
  %v281 = vadd.f32 %v258, %v275
  %v282 = vadd.f32 %v259, %v275
  %v283 = vadd.f32 %v260, %v275
  %v284 = vadd.f32 %v261, %v275
  %v285 = vadd.f32 %v262, %v275
  %v286 = vadd.f32 %v263, %v275
  %v287 = vadd.f32 %v264, %v275
  %v288 = vadd.f32 %v265, %v275
  %v289 = vadd.f32 %v266, %v275
  %v290 = vadd.f32 %v267, %v275
  %v291 = vadd.f32 %v268, %v275
  %v292 = vadd.f32 %v269, %v275
  %v293 = vmax.f32 %v277, 0.0
  %v294 = vmax.f32 %v278, 0.0
  %v295 = vmax.f32 %v279, 0.0
  %v296 = vmax.f32 %v280, 0.0
  %v297 = vmax.f32 %v281, 0.0
  %v298 = vmax.f32 %v282, 0.0
  %v299 = vmax.f32 %v283, 0.0
  %v300 = vmax.f32 %v284, 0.0
  %v301 = vmax.f32 %v285, 0.0
  %v302 = vmax.f32 %v286, 0.0
  %v303 = vmax.f32 %v287, 0.0
  %v304 = vmax.f32 %v288, 0.0
  %v305 = vmax.f32 %v289, 0.0
  %v306 = vmax.f32 %v290, 0.0
  %v307 = vmax.f32 %v291, 0.0
  %v308 = vmax.f32 %v292, 0.0
  %v326 = vrot.slane 0.0, 6
  %v327 = vrot.slane %v293, 6
  %v328 = vrot.slane %v294, 6
  %v329 = vrot.slane %v295, 6
  %v330 = vrot.slane %v296, 6
  %v331 = vrot.slane %v297, 6
  %v332 = vrot.slane %v298, 6
  %v333 = vrot.slane %v299, 6
  %v334 = vrot.slane %v300, 6
  %v335 = vrot.slane %v301, 6
  %v336 = vrot.slane %v302, 6
  %v337 = vrot.slane %v303, 6
  %v338 = vrot.slane %v304, 6
  %v339 = vrot.slane %v305, 6
  %v340 = vrot.slane %v306, 6
  %v341 = vrot.slane %v307, 6
  %v342 = vrot.slane %v308, 6
  %vm360 = vcmask 1041408
  %v361 = vsel %vm360, 0.0, %v326
  %v362 = vsel %vm360, 0.0, %v327
  %v363 = vsel %vm360, 0.0, %v328
  %v364 = vsel %vm360, 0.0, %v329
  %v365 = vsel %vm360, 0.0, %v330
  %v366 = vsel %vm360, 0.0, %v331
  %v367 = vsel %vm360, 0.0, %v332
  %v368 = vsel %vm360, 0.0, %v333
  %v369 = vsel %vm360, 0.0, %v334
  %v370 = vsel %vm360, 0.0, %v335
  %v371 = vsel %vm360, 0.0, %v336
  %v372 = vsel %vm360, 0.0, %v337
  %v373 = vsel %vm360, 0.0, %v338
  %v374 = vsel %vm360, 0.0, %v339
  %v375 = vsel %vm360, 0.0, %v340
  %v376 = vsel %vm360, 0.0, %v341
  %v377 = vsel %vm360, 0.0, %v342
  %v378 = vsel %vm360, %v326, 0.0
  %v379 = vsel %vm360, %v327, 0.0
  %v380 = vsel %vm360, %v328, 0.0
  %v381 = vsel %vm360, %v329, 0.0
  %v382 = vsel %vm360, %v330, 0.0
  %v383 = vsel %vm360, %v331, 0.0
  %v384 = vsel %vm360, %v332, 0.0
  %v385 = vsel %vm360, %v333, 0.0
  %v386 = vsel %vm360, %v334, 0.0
  %v387 = vsel %vm360, %v335, 0.0
  %v388 = vsel %vm360, %v336, 0.0
  %v389 = vsel %vm360, %v337, 0.0
  %v390 = vsel %vm360, %v338, 0.0
  %v391 = vsel %vm360, %v339, 0.0
  %v392 = vsel %vm360, %v340, 0.0
  %v393 = vsel %vm360, %v341, 0.0
  %v394 = vsel %vm360, %v342, 0.0
  %vm421 = vcmask 1045504
  %v422 = vrot.slane %v361, 2
  %v423 = vrot.slane %v378, 2
  %v424 = vsel %vm421, %v422, %v423
  %v425 = vrot.slane %v362, 2
  %v426 = vrot.slane %v379, 2
  %v427 = vsel %vm421, %v425, %v426
  %v428 = vrot.slane %v363, 2
  %v429 = vrot.slane %v380, 2
  %v430 = vsel %vm421, %v428, %v429
  %v431 = vrot.slane %v364, 2
  %v432 = vrot.slane %v381, 2
  %v433 = vsel %vm421, %v431, %v432
  %v434 = vrot.slane %v365, 2
  %v435 = vrot.slane %v382, 2
  %v436 = vsel %vm421, %v434, %v435
  %v437 = vrot.slane %v366, 2
  %v438 = vrot.slane %v383, 2
  %v439 = vsel %vm421, %v437, %v438
  %v440 = vrot.slane %v367, 2
  %v441 = vrot.slane %v384, 2
  %v442 = vsel %vm421, %v440, %v441
  %v443 = vrot.slane %v370, 2
  %v444 = vrot.slane %v387, 2
  %v445 = vsel %vm421, %v443, %v444
  %v446 = vrot.slane %v371, 2
  %v447 = vrot.slane %v388, 2
  %v448 = vsel %vm421, %v446, %v447
  %v449 = vrot.slane %v372, 2
  %v450 = vrot.slane %v389, 2
  %v451 = vsel %vm421, %v449, %v450
  %v452 = vrot.slane %v373, 2
  %v453 = vrot.slane %v390, 2
  %v454 = vsel %vm421, %v452, %v453
  %v455 = vrot.slane %v374, 2
  %v456 = vrot.slane %v391, 2
  %v457 = vsel %vm421, %v455, %v456
  %v458 = vrot.slane %v375, 2
  %v459 = vrot.slane %v392, 2
  %v460 = vsel %vm421, %v458, %v459
  %461 = vrot.lane.b32.xlu0 %v424, 4
  %v462 = vpop.permute.xlu0 %461
  %463 = vrot.lane.b32.xlu0 %v427, 4
  %v464 = vpop.permute.xlu0 %463
  %465 = vrot.lane.b32.xlu0 %v430, 4
  %v466 = vpop.permute.xlu0 %465
  %467 = vrot.lane.b32.xlu0 %v433, 4
  %v468 = vpop.permute.xlu0 %467
  %469 = vrot.lane.b32.xlu0 %v436, 4
  %v470 = vpop.permute.xlu0 %469
  %471 = vrot.lane.b32.xlu0 %v439, 4
  %v472 = vpop.permute.xlu0 %471
  %473 = vrot.lane.b32.xlu0 %v442, 4
  %v474 = vpop.permute.xlu0 %473
  %475 = vrot.lane.b32.xlu0 %v445, 4
  %v476 = vpop.permute.xlu0 %475
  %477 = vrot.lane.b32.xlu0 %v448, 4
  %v478 = vpop.permute.xlu0 %477
  %479 = vrot.lane.b32.xlu0 %v451, 4
  %v480 = vpop.permute.xlu0 %479
  %481 = vrot.lane.b32.xlu0 %v454, 4
  %v482 = vpop.permute.xlu0 %481
  %483 = vrot.lane.b32.xlu0 %v457, 4
  %v484 = vpop.permute.xlu0 %483
  %485 = vrot.lane.b32.xlu0 %v460, 4
  %v486 = vpop.permute.xlu0 %485
  %vm500 = vcmask 1043456
  %v501 = vrot.slane %v361, 4
  %v502 = vrot.slane %v378, 4
  %v503 = vsel %vm500, %v501, %v502
  %v504 = vrot.slane %v362, 4
  %v505 = vrot.slane %v379, 4
  %v506 = vsel %vm500, %v504, %v505
  %v507 = vrot.slane %v363, 4
  %v508 = vrot.slane %v380, 4
  %v509 = vsel %vm500, %v507, %v508
  %v510 = vrot.slane %v364, 4
  %v511 = vrot.slane %v381, 4
  %v512 = vsel %vm500, %v510, %v511
  %v513 = vrot.slane %v365, 4
  %v514 = vrot.slane %v382, 4
  %v515 = vsel %vm500, %v513, %v514
  %v516 = vrot.slane %v366, 4
  %v517 = vrot.slane %v383, 4
  %v518 = vsel %vm500, %v516, %v517
  %v519 = vrot.slane %v367, 4
  %v520 = vrot.slane %v384, 4
  %v521 = vsel %vm500, %v519, %v520
  %v522 = vrot.slane %v370, 4
  %v523 = vrot.slane %v387, 4
  %v524 = vsel %vm500, %v522, %v523
  %v525 = vrot.slane %v371, 4
  %v526 = vrot.slane %v388, 4
  %v527 = vsel %vm500, %v525, %v526
  %v528 = vrot.slane %v372, 4
  %v529 = vrot.slane %v389, 4
  %v530 = vsel %vm500, %v528, %v529
  %v531 = vrot.slane %v373, 4
  %v532 = vrot.slane %v390, 4
  %v533 = vsel %vm500, %v531, %v532
  %v534 = vrot.slane %v374, 4
  %v535 = vrot.slane %v391, 4
  %v536 = vsel %vm500, %v534, %v535
  %v537 = vrot.slane %v375, 4
  %v538 = vrot.slane %v392, 4
  %v539 = vsel %vm500, %v537, %v538
  %540 = vrot.lane.b32.xlu0 %v503, 8
  %v541 = vpop.permute.xlu0 %540
  %542 = vrot.lane.b32.xlu0 %v506, 8
  %v543 = vpop.permute.xlu0 %542
  %544 = vrot.lane.b32.xlu0 %v509, 8
  %v545 = vpop.permute.xlu0 %544
  %546 = vrot.lane.b32.xlu0 %v512, 8
  %v547 = vpop.permute.xlu0 %546
  %548 = vrot.lane.b32.xlu0 %v515, 8
  %v549 = vpop.permute.xlu0 %548
  %550 = vrot.lane.b32.xlu0 %v518, 8
  %v551 = vpop.permute.xlu0 %550
  %552 = vrot.lane.b32.xlu0 %v521, 8
  %v553 = vpop.permute.xlu0 %552
  %554 = vrot.lane.b32.xlu0 %v524, 8
  %v555 = vpop.permute.xlu0 %554
  %556 = vrot.lane.b32.xlu0 %v527, 8
  %v557 = vpop.permute.xlu0 %556
  %558 = vrot.lane.b32.xlu0 %v530, 8
  %v559 = vpop.permute.xlu0 %558
  %560 = vrot.lane.b32.xlu0 %v533, 8
  %v561 = vpop.permute.xlu0 %560
  %562 = vrot.lane.b32.xlu0 %v536, 8
  %v563 = vpop.permute.xlu0 %562
  %564 = vrot.lane.b32.xlu0 %v539, 8
  %v565 = vpop.permute.xlu0 %564
  %583 = vrot.lane.b32.xlu0 %v362, 12
  %v584 = vpop.permute.xlu0 %583
  %585 = vrot.lane.b32.xlu0 %v363, 12
  %v586 = vpop.permute.xlu0 %585
  %587 = vrot.lane.b32.xlu0 %v364, 12
  %v588 = vpop.permute.xlu0 %587
  %589 = vrot.lane.b32.xlu0 %v365, 12
  %v590 = vpop.permute.xlu0 %589
  %591 = vrot.lane.b32.xlu0 %v366, 12
  %v592 = vpop.permute.xlu0 %591
  %593 = vrot.lane.b32.xlu0 %v367, 12
  %v594 = vpop.permute.xlu0 %593
  %595 = vrot.lane.b32.xlu0 %v368, 12
  %v596 = vpop.permute.xlu0 %595
  %597 = vrot.lane.b32.xlu0 %v369, 12
  %v598 = vpop.permute.xlu0 %597
  %599 = vrot.lane.b32.xlu0 %v370, 12
  %v600 = vpop.permute.xlu0 %599
  %601 = vrot.lane.b32.xlu0 %v371, 12
  %v602 = vpop.permute.xlu0 %601
  %603 = vrot.lane.b32.xlu0 %v372, 12
  %v604 = vpop.permute.xlu0 %603
  %605 = vrot.lane.b32.xlu0 %v373, 12
  %v606 = vpop.permute.xlu0 %605
  %607 = vrot.lane.b32.xlu0 %v374, 12
  %v608 = vpop.permute.xlu0 %607
  %609 = vrot.lane.b32.xlu0 %v375, 12
  %v610 = vpop.permute.xlu0 %609
  %611 = vrot.lane.b32.xlu0 %v376, 12
  %v612 = vpop.permute.xlu0 %611
  %613 = vrot.lane.b32.xlu0 %v377, 12
  %v614 = vpop.permute.xlu0 %613
  %v635 = vrot.slane %v368, 2
  %v636 = vrot.slane %v385, 2
  %v637 = vsel %vm421, %v635, %v636
  %v638 = vrot.slane %v369, 2
  %v639 = vrot.slane %v386, 2
  %v640 = vsel %vm421, %v638, %v639
  %v641 = vrot.slane %v376, 2
  %v642 = vrot.slane %v393, 2
  %v643 = vsel %vm421, %v641, %v642
  %v644 = vrot.slane %v377, 2
  %v645 = vrot.slane %v394, 2
  %v646 = vsel %vm421, %v644, %v645
  %647 = vrot.lane.b32.xlu0 %v427, 16
  %v648 = vpop.permute.xlu0 %647
  %649 = vrot.lane.b32.xlu0 %v430, 16
  %v650 = vpop.permute.xlu0 %649
  %651 = vrot.lane.b32.xlu0 %v433, 16
  %v652 = vpop.permute.xlu0 %651
  %653 = vrot.lane.b32.xlu0 %v436, 16
  %v654 = vpop.permute.xlu0 %653
  %655 = vrot.lane.b32.xlu0 %v439, 16
  %v656 = vpop.permute.xlu0 %655
  %657 = vrot.lane.b32.xlu0 %v442, 16
  %v658 = vpop.permute.xlu0 %657
  %659 = vrot.lane.b32.xlu0 %v637, 16
  %v660 = vpop.permute.xlu0 %659
  %661 = vrot.lane.b32.xlu0 %v640, 16
  %v662 = vpop.permute.xlu0 %661
  %663 = vrot.lane.b32.xlu0 %v445, 16
  %v664 = vpop.permute.xlu0 %663
  %665 = vrot.lane.b32.xlu0 %v448, 16
  %v666 = vpop.permute.xlu0 %665
  %667 = vrot.lane.b32.xlu0 %v451, 16
  %v668 = vpop.permute.xlu0 %667
  %669 = vrot.lane.b32.xlu0 %v454, 16
  %v670 = vpop.permute.xlu0 %669
  %671 = vrot.lane.b32.xlu0 %v457, 16
  %v672 = vpop.permute.xlu0 %671
  %673 = vrot.lane.b32.xlu0 %v460, 16
  %v674 = vpop.permute.xlu0 %673
  %675 = vrot.lane.b32.xlu0 %v643, 16
  %v676 = vpop.permute.xlu0 %675
  %677 = vrot.lane.b32.xlu0 %v646, 16
  %v678 = vpop.permute.xlu0 %677
  %v695 = vrot.slane %v368, 4
  %v696 = vrot.slane %v385, 4
  %v697 = vsel %vm500, %v695, %v696
  %v698 = vrot.slane %v369, 4
  %v699 = vrot.slane %v386, 4
  %v700 = vsel %vm500, %v698, %v699
  %v701 = vrot.slane %v376, 4
  %v702 = vrot.slane %v393, 4
  %v703 = vsel %vm500, %v701, %v702
  %v704 = vrot.slane %v377, 4
  %v705 = vrot.slane %v394, 4
  %v706 = vsel %vm500, %v704, %v705
  %707 = vrot.lane.b32.xlu0 %v506, 20
  %v708 = vpop.permute.xlu0 %707
  %709 = vrot.lane.b32.xlu0 %v509, 20
  %v710 = vpop.permute.xlu0 %709
  %711 = vrot.lane.b32.xlu0 %v512, 20
  %v712 = vpop.permute.xlu0 %711
  %713 = vrot.lane.b32.xlu0 %v515, 20
  %v714 = vpop.permute.xlu0 %713
  %715 = vrot.lane.b32.xlu0 %v518, 20
  %v716 = vpop.permute.xlu0 %715
  %717 = vrot.lane.b32.xlu0 %v521, 20
  %v718 = vpop.permute.xlu0 %717
  %719 = vrot.lane.b32.xlu0 %v697, 20
  %v720 = vpop.permute.xlu0 %719
  %721 = vrot.lane.b32.xlu0 %v700, 20
  %v722 = vpop.permute.xlu0 %721
  %723 = vrot.lane.b32.xlu0 %v524, 20
  %v724 = vpop.permute.xlu0 %723
  %725 = vrot.lane.b32.xlu0 %v527, 20
  %v726 = vpop.permute.xlu0 %725
  %727 = vrot.lane.b32.xlu0 %v530, 20
  %v728 = vpop.permute.xlu0 %727
  %729 = vrot.lane.b32.xlu0 %v533, 20
  %v730 = vpop.permute.xlu0 %729
  %731 = vrot.lane.b32.xlu0 %v536, 20
  %v732 = vpop.permute.xlu0 %731
  %733 = vrot.lane.b32.xlu0 %v539, 20
  %v734 = vpop.permute.xlu0 %733
  %735 = vrot.lane.b32.xlu0 %v703, 20
  %v736 = vpop.permute.xlu0 %735
  %737 = vrot.lane.b32.xlu0 %v706, 20
  %v738 = vpop.permute.xlu0 %737
  %755 = vrot.lane.b32.xlu0 %v364, 24
  %v756 = vpop.permute.xlu0 %755
  %757 = vrot.lane.b32.xlu0 %v365, 24
  %v758 = vpop.permute.xlu0 %757
  %759 = vrot.lane.b32.xlu0 %v366, 24
  %v760 = vpop.permute.xlu0 %759
  %761 = vrot.lane.b32.xlu0 %v367, 24
  %v762 = vpop.permute.xlu0 %761
  %763 = vrot.lane.b32.xlu0 %v368, 24
  %v764 = vpop.permute.xlu0 %763
  %765 = vrot.lane.b32.xlu0 %v369, 24
  %v766 = vpop.permute.xlu0 %765
  %767 = vrot.lane.b32.xlu0 %v361, 24
  %v768 = vpop.permute.xlu0 %767
  %769 = vrot.lane.b32.xlu0 %v372, 24
  %v770 = vpop.permute.xlu0 %769
  %771 = vrot.lane.b32.xlu0 %v373, 24
  %v772 = vpop.permute.xlu0 %771
  %773 = vrot.lane.b32.xlu0 %v374, 24
  %v774 = vpop.permute.xlu0 %773
  %775 = vrot.lane.b32.xlu0 %v375, 24
  %v776 = vpop.permute.xlu0 %775
  %777 = vrot.lane.b32.xlu0 %v376, 24
  %v778 = vpop.permute.xlu0 %777
  %779 = vrot.lane.b32.xlu0 %v377, 24
  %v780 = vpop.permute.xlu0 %779
  %794 = vrot.lane.b32.xlu0 %v433, 28
  %v795 = vpop.permute.xlu0 %794
  %796 = vrot.lane.b32.xlu0 %v436, 28
  %v797 = vpop.permute.xlu0 %796
  %798 = vrot.lane.b32.xlu0 %v439, 28
  %v799 = vpop.permute.xlu0 %798
  %800 = vrot.lane.b32.xlu0 %v442, 28
  %v801 = vpop.permute.xlu0 %800
  %802 = vrot.lane.b32.xlu0 %v637, 28
  %v803 = vpop.permute.xlu0 %802
  %804 = vrot.lane.b32.xlu0 %v640, 28
  %v805 = vpop.permute.xlu0 %804
  %806 = vrot.lane.b32.xlu0 %v424, 28
  %v807 = vpop.permute.xlu0 %806
  %808 = vrot.lane.b32.xlu0 %v451, 28
  %v809 = vpop.permute.xlu0 %808
  %810 = vrot.lane.b32.xlu0 %v454, 28
  %v811 = vpop.permute.xlu0 %810
  %812 = vrot.lane.b32.xlu0 %v457, 28
  %v813 = vpop.permute.xlu0 %812
  %814 = vrot.lane.b32.xlu0 %v460, 28
  %v815 = vpop.permute.xlu0 %814
  %816 = vrot.lane.b32.xlu0 %v643, 28
  %v817 = vpop.permute.xlu0 %816
  %818 = vrot.lane.b32.xlu0 %v646, 28
  %v819 = vpop.permute.xlu0 %818
  %833 = vrot.lane.b32.xlu0 %v512, 32
  %v834 = vpop.permute.xlu0 %833
  %835 = vrot.lane.b32.xlu0 %v515, 32
  %v836 = vpop.permute.xlu0 %835
  %837 = vrot.lane.b32.xlu0 %v518, 32
  %v838 = vpop.permute.xlu0 %837
  %839 = vrot.lane.b32.xlu0 %v521, 32
  %v840 = vpop.permute.xlu0 %839
  %841 = vrot.lane.b32.xlu0 %v697, 32
  %v842 = vpop.permute.xlu0 %841
  %843 = vrot.lane.b32.xlu0 %v700, 32
  %v844 = vpop.permute.xlu0 %843
  %845 = vrot.lane.b32.xlu0 %v503, 32
  %v846 = vpop.permute.xlu0 %845
  %847 = vrot.lane.b32.xlu0 %v530, 32
  %v848 = vpop.permute.xlu0 %847
  %849 = vrot.lane.b32.xlu0 %v533, 32
  %v850 = vpop.permute.xlu0 %849
  %851 = vrot.lane.b32.xlu0 %v536, 32
  %v852 = vpop.permute.xlu0 %851
  %853 = vrot.lane.b32.xlu0 %v539, 32
  %v854 = vpop.permute.xlu0 %853
  %855 = vrot.lane.b32.xlu0 %v703, 32
  %v856 = vpop.permute.xlu0 %855
  %857 = vrot.lane.b32.xlu0 %v706, 32
  %v858 = vpop.permute.xlu0 %857
  %vm872 = vcmask 31744
  %v873 = vsel %vm872, %v361, %v462
  %v874 = vsel %vm872, %v362, %v464
  %v875 = vsel %vm872, %v363, %v466
  %v876 = vsel %vm872, %v364, %v468
  %v877 = vsel %vm872, %v365, %v470
  %v878 = vsel %vm872, %v366, %v472
  %v879 = vsel %vm872, %v367, %v474
  %v880 = vsel %vm872, %v370, %v476
  %v881 = vsel %vm872, %v371, %v478
  %v882 = vsel %vm872, %v372, %v480
  %v883 = vsel %vm872, %v373, %v482
  %v884 = vsel %vm872, %v374, %v484
  %v885 = vsel %vm872, %v375, %v486
  %vm886 = vcmask 64512
  %v887 = vsel %vm886, %v873, %v541
  %v888 = vsel %vm886, %v874, %v543
  %v889 = vsel %vm886, %v875, %v545
  %v890 = vsel %vm886, %v876, %v547
  %v891 = vsel %vm886, %v877, %v549
  %v892 = vsel %vm886, %v878, %v551
  %v893 = vsel %vm886, %v879, %v553
  %v894 = vsel %vm886, %v880, %v555
  %v895 = vsel %vm886, %v881, %v557
  %v896 = vsel %vm886, %v882, %v559
  %v897 = vsel %vm886, %v883, %v561
  %v898 = vsel %vm886, %v884, %v563
  %v899 = vsel %vm886, %v885, %v565
  %vm900 = vcmask 97280
  %v901 = vsel %vm900, %v887, %v584
  %v902 = vsel %vm900, %v887, %v586
  %v903 = vsel %vm900, %v888, %v588
  %v904 = vsel %vm900, %v889, %v590
  %v905 = vsel %vm900, %v890, %v592
  %v906 = vsel %vm900, %v891, %v594
  %v907 = vsel %vm900, %v892, %v596
  %v908 = vsel %vm900, %v893, %v598
  %v909 = vsel %vm900, %v887, %v600
  %v910 = vsel %vm900, %v887, %v602
  %v911 = vsel %vm900, %v894, %v604
  %v912 = vsel %vm900, %v895, %v606
  %v913 = vsel %vm900, %v896, %v608
  %v914 = vsel %vm900, %v897, %v610
  %v915 = vsel %vm900, %v898, %v612
  %v916 = vsel %vm900, %v899, %v614
  %v917 = vsel %vm53, %v901, %v648
  %v918 = vsel %vm53, %v902, %v650
  %v919 = vsel %vm53, %v903, %v652
  %v920 = vsel %vm53, %v904, %v654
  %v921 = vsel %vm53, %v905, %v656
  %v922 = vsel %vm53, %v906, %v658
  %v923 = vsel %vm53, %v907, %v660
  %v924 = vsel %vm53, %v908, %v662
  %v925 = vsel %vm53, %v909, %v664
  %v926 = vsel %vm53, %v910, %v666
  %v927 = vsel %vm53, %v911, %v668
  %v928 = vsel %vm53, %v912, %v670
  %v929 = vsel %vm53, %v913, %v672
  %v930 = vsel %vm53, %v914, %v674
  %v931 = vsel %vm53, %v915, %v676
  %v932 = vsel %vm53, %v916, %v678
  %vm933 = vcmask 162816
  %v934 = vsel %vm933, %v917, %v708
  %v935 = vsel %vm933, %v918, %v710
  %v936 = vsel %vm933, %v919, %v712
  %v937 = vsel %vm933, %v920, %v714
  %v938 = vsel %vm933, %v921, %v716
  %v939 = vsel %vm933, %v922, %v718
  %v940 = vsel %vm933, %v923, %v720
  %v941 = vsel %vm933, %v924, %v722
  %v942 = vsel %vm933, %v925, %v724
  %v943 = vsel %vm933, %v926, %v726
  %v944 = vsel %vm933, %v927, %v728
  %v945 = vsel %vm933, %v928, %v730
  %v946 = vsel %vm933, %v929, %v732
  %v947 = vsel %vm933, %v930, %v734
  %v948 = vsel %vm933, %v931, %v736
  %v949 = vsel %vm933, %v932, %v738
  %vm950 = vcmask 195584
  %v951 = vsel %vm950, %v934, %v756
  %v952 = vsel %vm950, %v935, %v758
  %v953 = vsel %vm950, %v936, %v760
  %v954 = vsel %vm950, %v937, %v762
  %v955 = vsel %vm950, %v938, %v764
  %v956 = vsel %vm950, %v939, %v766
  %v957 = vsel %vm950, %v940, %v768
  %v958 = vsel %vm950, %v941, %v768
  %v959 = vsel %vm950, %v942, %v770
  %v960 = vsel %vm950, %v943, %v772
  %v961 = vsel %vm950, %v944, %v774
  %v962 = vsel %vm950, %v945, %v776
  %v963 = vsel %vm950, %v946, %v778
  %v964 = vsel %vm950, %v947, %v780
  %v965 = vsel %vm950, %v948, %v768
  %v966 = vsel %vm950, %v949, %v768
  %vm967 = vcmask 228352
  %v968 = vsel %vm967, %v951, %v795
  %v969 = vsel %vm967, %v952, %v797
  %v970 = vsel %vm967, %v953, %v799
  %v971 = vsel %vm967, %v954, %v801
  %v972 = vsel %vm967, %v955, %v803
  %v973 = vsel %vm967, %v956, %v805
  %v974 = vsel %vm967, %v957, %v807
  %v975 = vsel %vm967, %v958, %v807
  %v976 = vsel %vm967, %v959, %v809
  %v977 = vsel %vm967, %v960, %v811
  %v978 = vsel %vm967, %v961, %v813
  %v979 = vsel %vm967, %v962, %v815
  %v980 = vsel %vm967, %v963, %v817
  %v981 = vsel %vm967, %v964, %v819
  %v982 = vsel %vm967, %v965, %v807
  %v983 = vsel %vm967, %v966, %v807
  %vm984 = vcmask 261120
  %v985 = vsel %vm984, %v968, %v834
  %v986 = vsel %vm984, %v969, %v836
  %v987 = vsel %vm984, %v970, %v838
  %v988 = vsel %vm984, %v971, %v840
  %v989 = vsel %vm984, %v972, %v842
  %v990 = vsel %vm984, %v973, %v844
  %v991 = vsel %vm984, %v974, %v846
  %v992 = vsel %vm984, %v975, %v846
  %v993 = vsel %vm984, %v976, %v848
  %v994 = vsel %vm984, %v977, %v850
  %v995 = vsel %vm984, %v978, %v852
  %v996 = vsel %vm984, %v979, %v854
  %v997 = vsel %vm984, %v980, %v856
  %v998 = vsel %vm984, %v981, %v858
  %v999 = vsel %vm984, %v982, %v846
  %v1000 = vsel %vm984, %v983, %v846
  %v1001 = vld [vmem:[%s4] sm:$0xff]
  %v1002 = vld [vmem:[%s4 + $0x8] sm:$0xff]
  %v1003 = vld [vmem:[%s4 + $0x10] sm:$0xff]
  %v1004 = vld [vmem:[%s4 + $0x18] sm:$0xff]
  %v1005 = vld [vmem:[%s4 + $0x20] sm:$0xf]
  %vm1006 = vcmask 293888
  %v1008 = vsel %vm1006, %v985, 0
  %v1011 = vsel %vm1006, %v986, 0
  %v1014 = vsel %vm1006, %v987, 0
  %v1017 = vsel %vm1006, %v988, 0
  %v1020 = vsel %vm1006, %v989, 0
  %v1023 = vsel %vm1006, %v990, 0
  %v1026 = vsel %vm1006, %v991, 0
  %v1029 = vsel %vm1006, %v992, 0
  %v1032 = vsel %vm1006, %v993, 0
  %v1035 = vsel %vm1006, %v994, 0
  %v1038 = vsel %vm1006, %v995, 0
  %v1041 = vsel %vm1006, %v996, 0
  %v1044 = vsel %vm1006, %v997, 0
  %v1047 = vsel %vm1006, %v998, 0
  %v1050 = vsel %vm1006, %v999, 0
  %v1053 = vsel %vm1006, %v1000, 0
  %v1056 = vsel %vm500, %v1005, 0
  %1058 = vmatprep.subr.mxu0 0.0
  %1059 = vmatpush1.msra.mxu0 0.0
  %1060 = vmatprep.subr.mxu0 0.0
  %1061 = vmatpush1.msra.mxu0 0.0
  %1062 = vmatprep.subr.mxu0 0.0
  %1063 = vmatpush1.msra.mxu0 0.0
  %1064 = vmatprep.subr.mxu0 0.0
  %1065 = vmatpush1.msra.mxu0 0.0
  %1066 = vmatprep.subr.mxu0 0.0
  %1067 = vmatpush1.msra.mxu0 0.0
  %1068 = vmatprep.subr.mxu0 0.0
  %1069 = vmatpush1.msra.mxu0 0.0
  %1070 = vmatprep.subr.mxu0 0.0
  %1071 = vmatpush1.msra.mxu0 0.0
  %1072 = vmatprep.subr.mxu0 0.0
  %1073 = vmatpush1.msra.mxu0 0.0
  %1074 = vmatprep.subr.mxu0 0.0
  %1075 = vmatpush1.msra.mxu0 0.0
  %1076 = vmatprep.subr.mxu0 0.0
  %1077 = vmatpush1.msra.mxu0 0.0
  %1078 = vmatprep.subr.mxu0 0.0
  %1079 = vmatpush1.msra.mxu0 0.0
  %1080 = vmatprep.subr.mxu0 0.0
  %1081 = vmatpush1.msra.mxu0 %v1056
  %1082 = vmatprep.subr.mxu0 0.0
  %1083 = vmatpush1.msra.mxu0 %v1004
  %1084 = vmatprep.subr.mxu0 0.0
  %1085 = vmatpush1.msra.mxu0 %v1003
  %1086 = vmatprep.subr.mxu0 0.0
  %1087 = vmatpush1.msra.mxu0 %v1002
  %1088 = vmatprep.subr.mxu0 0.0
  %1089 = vmatpush1.msra.mxu0 %v1001
  %1090 = vmatprep.subr.mxu0 0.0
  %1091 = vmatpush2.msra.mxu0 0.0
  %1092 = vmatprep.subr.mxu0 0.0
  %1093 = vmatpush2.msra.mxu0 0.0
  %1094 = vmatprep.subr.mxu0 0.0
  %1095 = vmatpush2.msra.mxu0 0.0
  %1096 = vmatprep.subr.mxu0 0.0
  %1097 = vmatpush2.msra.mxu0 0.0
  %1098 = vmatprep.subr.mxu0 0.0
  %1099 = vmatpush2.msra.mxu0 0.0
  %1100 = vmatprep.subr.mxu0 0.0
  %1101 = vmatpush2.msra.mxu0 0.0
  %1102 = vmatprep.subr.mxu0 0.0
  %1103 = vmatpush2.msra.mxu0 0.0
  %1104 = vmatprep.subr.mxu0 0.0
  %1105 = vmatpush2.msra.mxu0 0.0
  %1106 = vmatprep.subr.mxu0 0.0
  %1107 = vmatpush2.msra.mxu0 0.0
  %1108 = vmatprep.subr.mxu0 0.0
  %1109 = vmatpush2.msra.mxu0 0.0
  %1110 = vmatprep.subr.mxu0 0.0
  %1111 = vmatpush2.msra.mxu0 0.0
  %1112 = vmatprep.subr.mxu0 0.0
  %1113 = vmatpush2.msra.mxu0 0.0
  %1114 = vmatprep.subr.mxu0 0.0
  %1115 = vmatpush2.msra.mxu0 0.0
  %1116 = vmatprep.subr.mxu0 0.0
  %1117 = vmatpush2.msra.mxu0 0.0
  %1118 = vmatprep.subr.mxu0 0.0
  %1119 = vmatpush2.msra.mxu0 0.0
  %1120 = vmatprep.subr.mxu0 0.0
  %1121 = vmatpush2.msra.mxu0 0.0
  %1122 = vmatprep.mubr.f32.mxu0 0.0
  %1123 = vmatmul.mubr.f32.gmra.mxu0 %v1008
  %v1124 = vpop.f32.mrf.mxu0
  %v1125 = vadd.f32 0.0, %v1124
  %v1126 = vpop.f32.mrf.mxu0
  %1127 = vmatprep.mubr.f32.mxu0 0.0
  %1128 = vmatmul.mubr.f32.gmra.mxu0 %v1011
  %v1129 = vpop.f32.mrf.mxu0
  %v1130 = vadd.f32 0.0, %v1129
  %v1131 = vpop.f32.mrf.mxu0
  %1132 = vmatprep.mubr.f32.mxu0 0.0
  %1133 = vmatmul.mubr.f32.gmra.mxu0 %v1014
  %v1134 = vpop.f32.mrf.mxu0
  %v1135 = vadd.f32 0.0, %v1134
  %v1136 = vpop.f32.mrf.mxu0
  %1137 = vmatprep.mubr.f32.mxu0 0.0
  %1138 = vmatmul.mubr.f32.gmra.mxu0 %v1017
  %v1139 = vpop.f32.mrf.mxu0
  %v1140 = vadd.f32 0.0, %v1139
  %v1141 = vpop.f32.mrf.mxu0
  %1142 = vmatprep.mubr.f32.mxu0 0.0
  %1143 = vmatmul.mubr.f32.gmra.mxu0 %v1020
  %v1144 = vpop.f32.mrf.mxu0
  %v1145 = vadd.f32 0.0, %v1144
  %v1146 = vpop.f32.mrf.mxu0
  %1147 = vmatprep.mubr.f32.mxu0 0.0
  %1148 = vmatmul.mubr.f32.gmra.mxu0 %v1023
  %v1149 = vpop.f32.mrf.mxu0
  %v1150 = vadd.f32 0.0, %v1149
  %v1151 = vpop.f32.mrf.mxu0
  %1152 = vmatprep.mubr.f32.mxu0 0.0
  %1153 = vmatmul.mubr.f32.gmra.mxu0 %v1026
  %v1154 = vpop.f32.mrf.mxu0
  %v1155 = vadd.f32 0.0, %v1154
  %v1156 = vpop.f32.mrf.mxu0
  %1157 = vmatprep.mubr.f32.mxu0 0.0
  %1158 = vmatmul.mubr.f32.gmra.mxu0 %v1029
  %v1159 = vpop.f32.mrf.mxu0
  %v1160 = vadd.f32 0.0, %v1159
  %v1161 = vpop.f32.mrf.mxu0
  %1162 = vmatprep.mubr.f32.mxu0 0.0
  %1163 = vmatmul.mubr.f32.gmra.mxu0 %v1032
  %v1164 = vpop.f32.mrf.mxu0
  %v1165 = vadd.f32 0.0, %v1164
  %v1166 = vpop.f32.mrf.mxu0
  %1167 = vmatprep.mubr.f32.mxu0 0.0
  %1168 = vmatmul.mubr.f32.gmra.mxu0 %v1035
  %v1169 = vpop.f32.mrf.mxu0
  %v1170 = vadd.f32 0.0, %v1169
  %v1171 = vpop.f32.mrf.mxu0
  %1172 = vmatprep.mubr.f32.mxu0 0.0
  %1173 = vmatmul.mubr.f32.gmra.mxu0 %v1038
  %v1174 = vpop.f32.mrf.mxu0
  %v1175 = vadd.f32 0.0, %v1174
  %v1176 = vpop.f32.mrf.mxu0
  %1177 = vmatprep.mubr.f32.mxu0 0.0
  %1178 = vmatmul.mubr.f32.gmra.mxu0 %v1041
  %v1179 = vpop.f32.mrf.mxu0
  %v1180 = vadd.f32 0.0, %v1179
  %v1181 = vpop.f32.mrf.mxu0
  %1182 = vmatprep.mubr.f32.mxu0 0.0
  %1183 = vmatmul.mubr.f32.gmra.mxu0 %v1044
  %v1184 = vpop.f32.mrf.mxu0
  %v1185 = vadd.f32 0.0, %v1184
  %v1186 = vpop.f32.mrf.mxu0
  %1187 = vmatprep.mubr.f32.mxu0 0.0
  %1188 = vmatmul.mubr.f32.gmra.mxu0 %v1047
  %v1189 = vpop.f32.mrf.mxu0
  %v1190 = vadd.f32 0.0, %v1189
  %v1191 = vpop.f32.mrf.mxu0
  %1192 = vmatprep.mubr.f32.mxu0 0.0
  %1193 = vmatmul.mubr.f32.gmra.mxu0 %v1050
  %v1194 = vpop.f32.mrf.mxu0
  %v1195 = vadd.f32 0.0, %v1194
  %v1196 = vpop.f32.mrf.mxu0
  %1197 = vmatprep.mubr.f32.mxu0 0.0
  %1198 = vmatmul.mubr.f32.gmra.mxu0 %v1053
  %v1199 = vpop.f32.mrf.mxu0
  %v1200 = vadd.f32 0.0, %v1199
  %v1201 = vpop.f32.mrf.mxu0
  %1202 = vdwg.mxu0
  %v1203 = vld [vmem:[%s5] sm:$0x1]
  %v1205 = vlaneseq
  %v1206 = vshrl.u32 %v1205, 7
  %v1207 = vsub.s32 0, %v1206
  %v1208 = vrot.slane %v1203, %v1207
  %v1210 = vmul.f32 %v1125, %v1208
  %v1211 = vmul.f32 %v1130, %v1208
  %v1212 = vmul.f32 %v1135, %v1208
  %v1213 = vmul.f32 %v1140, %v1208
  %v1214 = vmul.f32 %v1145, %v1208
  %v1215 = vmul.f32 %v1150, %v1208
  %v1216 = vmul.f32 %v1155, %v1208
  %v1217 = vmul.f32 %v1160, %v1208
  %v1218 = vmul.f32 %v1165, %v1208
  %v1219 = vmul.f32 %v1170, %v1208
  %v1220 = vmul.f32 %v1175, %v1208
  %v1221 = vmul.f32 %v1180, %v1208
  %v1222 = vmul.f32 %v1185, %v1208
  %v1223 = vmul.f32 %v1190, %v1208
  %v1224 = vmul.f32 %v1195, %v1208
  %v1225 = vmul.f32 %v1200, %v1208
  %v1226 = vld [vmem:[%s6] sm:$0x1]
  %v1228 = vlaneseq
  %v1229 = vshrl.u32 %v1228, 7
  %v1230 = vsub.s32 0, %v1229
  %v1231 = vrot.slane %v1226, %v1230
  %v1233 = vadd.f32 %v1210, %v1231
  %v1234 = vadd.f32 %v1211, %v1231
  %v1235 = vadd.f32 %v1212, %v1231
  %v1236 = vadd.f32 %v1213, %v1231
  %v1237 = vadd.f32 %v1214, %v1231
  %v1238 = vadd.f32 %v1215, %v1231
  %v1239 = vadd.f32 %v1216, %v1231
  %v1240 = vadd.f32 %v1217, %v1231
  %v1241 = vadd.f32 %v1218, %v1231
  %v1242 = vadd.f32 %v1219, %v1231
  %v1243 = vadd.f32 %v1220, %v1231
  %v1244 = vadd.f32 %v1221, %v1231
  %v1245 = vadd.f32 %v1222, %v1231
  %v1246 = vadd.f32 %v1223, %v1231
  %v1247 = vadd.f32 %v1224, %v1231
  %v1248 = vadd.f32 %v1225, %v1231
  %v1249 = vmax.f32 %v1233, 0.0
  %v1250 = vmax.f32 %v1234, 0.0
  %v1251 = vmax.f32 %v1235, 0.0
  %v1252 = vmax.f32 %v1236, 0.0
  %v1253 = vmax.f32 %v1237, 0.0
  %v1254 = vmax.f32 %v1238, 0.0
  %v1255 = vmax.f32 %v1239, 0.0
  %v1256 = vmax.f32 %v1240, 0.0
  %v1257 = vmax.f32 %v1241, 0.0
  %v1258 = vmax.f32 %v1242, 0.0
  %v1259 = vmax.f32 %v1243, 0.0
  %v1260 = vmax.f32 %v1244, 0.0
  %v1261 = vmax.f32 %v1245, 0.0
  %v1262 = vmax.f32 %v1246, 0.0
  %v1263 = vmax.f32 %v1247, 0.0
  %v1264 = vmax.f32 %v1248, 0.0
  %v1265 = vld [vmem:[%s7] sm:$0xf]
  %v1267 = vsel %vm872, %v1249, 0
  %v1270 = vsel %vm872, %v1250, 0
  %v1273 = vsel %vm872, %v1251, 0
  %v1276 = vsel %vm872, %v1252, 0
  %v1279 = vsel %vm872, %v1253, 0
  %v1282 = vsel %vm872, %v1254, 0
  %v1285 = vsel %vm872, %v1255, 0
  %v1288 = vsel %vm872, %v1256, 0
  %v1291 = vsel %vm872, %v1257, 0
  %v1294 = vsel %vm872, %v1258, 0
  %v1297 = vsel %vm872, %v1259, 0
  %v1300 = vsel %vm872, %v1260, 0
  %v1303 = vsel %vm872, %v1261, 0
  %v1306 = vsel %vm872, %v1262, 0
  %v1309 = vsel %vm872, %v1263, 0
  %v1312 = vsel %vm872, %v1264, 0
  %v1315 = vsel %vm500, %v1265, 0
  %1317 = vmatprep.subr.mxu0 0.0
  %1318 = vmatpush1.msra.mxu0 0.0
  %1319 = vmatprep.subr.mxu0 0.0
  %1320 = vmatpush1.msra.mxu0 0.0
  %1321 = vmatprep.subr.mxu0 0.0
  %1322 = vmatpush1.msra.mxu0 0.0
  %1323 = vmatprep.subr.mxu0 0.0
  %1324 = vmatpush1.msra.mxu0 0.0
  %1325 = vmatprep.subr.mxu0 0.0
  %1326 = vmatpush1.msra.mxu0 0.0
  %1327 = vmatprep.subr.mxu0 0.0
  %1328 = vmatpush1.msra.mxu0 0.0
  %1329 = vmatprep.subr.mxu0 0.0
  %1330 = vmatpush1.msra.mxu0 0.0
  %1331 = vmatprep.subr.mxu0 0.0
  %1332 = vmatpush1.msra.mxu0 0.0
  %1333 = vmatprep.subr.mxu0 0.0
  %1334 = vmatpush1.msra.mxu0 0.0
  %1335 = vmatprep.subr.mxu0 0.0
  %1336 = vmatpush1.msra.mxu0 0.0
  %1337 = vmatprep.subr.mxu0 0.0
  %1338 = vmatpush1.msra.mxu0 0.0
  %1339 = vmatprep.subr.mxu0 0.0
  %1340 = vmatpush1.msra.mxu0 0.0
  %1341 = vmatprep.subr.mxu0 0.0
  %1342 = vmatpush1.msra.mxu0 0.0
  %1343 = vmatprep.subr.mxu0 0.0
  %1344 = vmatpush1.msra.mxu0 0.0
  %1345 = vmatprep.subr.mxu0 0.0
  %1346 = vmatpush1.msra.mxu0 0.0
  %1347 = vmatprep.subr.mxu0 0.0
  %1348 = vmatpush1.msra.mxu0 %v1315
  %1349 = vmatprep.subr.mxu0 0.0
  %1350 = vmatpush2.msra.mxu0 0.0
  %1351 = vmatprep.subr.mxu0 0.0
  %1352 = vmatpush2.msra.mxu0 0.0
  %1353 = vmatprep.subr.mxu0 0.0
  %1354 = vmatpush2.msra.mxu0 0.0
  %1355 = vmatprep.subr.mxu0 0.0
  %1356 = vmatpush2.msra.mxu0 0.0
  %1357 = vmatprep.subr.mxu0 0.0
  %1358 = vmatpush2.msra.mxu0 0.0
  %1359 = vmatprep.subr.mxu0 0.0
  %1360 = vmatpush2.msra.mxu0 0.0
  %1361 = vmatprep.subr.mxu0 0.0
  %1362 = vmatpush2.msra.mxu0 0.0
  %1363 = vmatprep.subr.mxu0 0.0
  %1364 = vmatpush2.msra.mxu0 0.0
  %1365 = vmatprep.subr.mxu0 0.0
  %1366 = vmatpush2.msra.mxu0 0.0
  %1367 = vmatprep.subr.mxu0 0.0
  %1368 = vmatpush2.msra.mxu0 0.0
  %1369 = vmatprep.subr.mxu0 0.0
  %1370 = vmatpush2.msra.mxu0 0.0
  %1371 = vmatprep.subr.mxu0 0.0
  %1372 = vmatpush2.msra.mxu0 0.0
  %1373 = vmatprep.subr.mxu0 0.0
  %1374 = vmatpush2.msra.mxu0 0.0
  %1375 = vmatprep.subr.mxu0 0.0
  %1376 = vmatpush2.msra.mxu0 0.0
  %1377 = vmatprep.subr.mxu0 0.0
  %1378 = vmatpush2.msra.mxu0 0.0
  %1379 = vmatprep.subr.mxu0 0.0
  %1380 = vmatpush2.msra.mxu0 0.0
  %1381 = vmatprep.mubr.f32.mxu0 0.0
  %1382 = vmatmul.mubr.f32.gmra.mxu0 %v1267
  %v1383 = vpop.f32.mrf.mxu0
  %v1384 = vadd.f32 0.0, %v1383
  %v1385 = vpop.f32.mrf.mxu0
  %1386 = vmatprep.mubr.f32.mxu0 0.0
  %1387 = vmatmul.mubr.f32.gmra.mxu0 %v1270
  %v1388 = vpop.f32.mrf.mxu0
  %v1389 = vadd.f32 0.0, %v1388
  %v1390 = vpop.f32.mrf.mxu0
  %1391 = vmatprep.mubr.f32.mxu0 0.0
  %1392 = vmatmul.mubr.f32.gmra.mxu0 %v1273
  %v1393 = vpop.f32.mrf.mxu0
  %v1394 = vadd.f32 0.0, %v1393
  %v1395 = vpop.f32.mrf.mxu0
  %1396 = vmatprep.mubr.f32.mxu0 0.0
  %1397 = vmatmul.mubr.f32.gmra.mxu0 %v1276
  %v1398 = vpop.f32.mrf.mxu0
  %v1399 = vadd.f32 0.0, %v1398
  %v1400 = vpop.f32.mrf.mxu0
  %1401 = vmatprep.mubr.f32.mxu0 0.0
  %1402 = vmatmul.mubr.f32.gmra.mxu0 %v1279
  %v1403 = vpop.f32.mrf.mxu0
  %v1404 = vadd.f32 0.0, %v1403
  %v1405 = vpop.f32.mrf.mxu0
  %1406 = vmatprep.mubr.f32.mxu0 0.0
  %1407 = vmatmul.mubr.f32.gmra.mxu0 %v1282
  %v1408 = vpop.f32.mrf.mxu0
  %v1409 = vadd.f32 0.0, %v1408
  %v1410 = vpop.f32.mrf.mxu0
  %1411 = vmatprep.mubr.f32.mxu0 0.0
  %1412 = vmatmul.mubr.f32.gmra.mxu0 %v1285
  %v1413 = vpop.f32.mrf.mxu0
  %v1414 = vadd.f32 0.0, %v1413
  %v1415 = vpop.f32.mrf.mxu0
  %1416 = vmatprep.mubr.f32.mxu0 0.0
  %1417 = vmatmul.mubr.f32.gmra.mxu0 %v1288
  %v1418 = vpop.f32.mrf.mxu0
  %v1419 = vadd.f32 0.0, %v1418
  %v1420 = vpop.f32.mrf.mxu0
  %1421 = vmatprep.mubr.f32.mxu0 0.0
  %1422 = vmatmul.mubr.f32.gmra.mxu0 %v1291
  %v1423 = vpop.f32.mrf.mxu0
  %v1424 = vadd.f32 0.0, %v1423
  %v1425 = vpop.f32.mrf.mxu0
  %1426 = vmatprep.mubr.f32.mxu0 0.0
  %1427 = vmatmul.mubr.f32.gmra.mxu0 %v1294
  %v1428 = vpop.f32.mrf.mxu0
  %v1429 = vadd.f32 0.0, %v1428
  %v1430 = vpop.f32.mrf.mxu0
  %1431 = vmatprep.mubr.f32.mxu0 0.0
  %1432 = vmatmul.mubr.f32.gmra.mxu0 %v1297
  %v1433 = vpop.f32.mrf.mxu0
  %v1434 = vadd.f32 0.0, %v1433
  %v1435 = vpop.f32.mrf.mxu0
  %1436 = vmatprep.mubr.f32.mxu0 0.0
  %1437 = vmatmul.mubr.f32.gmra.mxu0 %v1300
  %v1438 = vpop.f32.mrf.mxu0
  %v1439 = vadd.f32 0.0, %v1438
  %v1440 = vpop.f32.mrf.mxu0
  %1441 = vmatprep.mubr.f32.mxu0 0.0
  %1442 = vmatmul.mubr.f32.gmra.mxu0 %v1303
  %v1443 = vpop.f32.mrf.mxu0
  %v1444 = vadd.f32 0.0, %v1443
  %v1445 = vpop.f32.mrf.mxu0
  %1446 = vmatprep.mubr.f32.mxu0 0.0
  %1447 = vmatmul.mubr.f32.gmra.mxu0 %v1306
  %v1448 = vpop.f32.mrf.mxu0
  %v1449 = vadd.f32 0.0, %v1448
  %v1450 = vpop.f32.mrf.mxu0
  %1451 = vmatprep.mubr.f32.mxu0 0.0
  %1452 = vmatmul.mubr.f32.gmra.mxu0 %v1309
  %v1453 = vpop.f32.mrf.mxu0
  %v1454 = vadd.f32 0.0, %v1453
  %v1455 = vpop.f32.mrf.mxu0
  %1456 = vmatprep.mubr.f32.mxu0 0.0
  %1457 = vmatmul.mubr.f32.gmra.mxu0 %v1312
  %v1458 = vpop.f32.mrf.mxu0
  %v1459 = vadd.f32 0.0, %v1458
  %v1460 = vpop.f32.mrf.mxu0
  %1461 = vdwg.mxu0
  %v1462 = vld [vmem:[%s8] sm:$0x1]
  %v1464 = vlaneseq
  %v1465 = vshrl.u32 %v1464, 7
  %v1466 = vsub.s32 0, %v1465
  %v1467 = vrot.slane %v1462, %v1466
  %v1469 = vmul.f32 %v1384, %v1467
  %v1470 = vmul.f32 %v1389, %v1467
  %v1471 = vmul.f32 %v1394, %v1467
  %v1472 = vmul.f32 %v1399, %v1467
  %v1473 = vmul.f32 %v1404, %v1467
  %v1474 = vmul.f32 %v1409, %v1467
  %v1475 = vmul.f32 %v1414, %v1467
  %v1476 = vmul.f32 %v1419, %v1467
  %v1477 = vmul.f32 %v1424, %v1467
  %v1478 = vmul.f32 %v1429, %v1467
  %v1479 = vmul.f32 %v1434, %v1467
  %v1480 = vmul.f32 %v1439, %v1467
  %v1481 = vmul.f32 %v1444, %v1467
  %v1482 = vmul.f32 %v1449, %v1467
  %v1483 = vmul.f32 %v1454, %v1467
  %v1484 = vmul.f32 %v1459, %v1467
  %v1485 = vld [vmem:[%s9] sm:$0x1]
  %v1487 = vlaneseq
  %v1488 = vshrl.u32 %v1487, 7
  %v1489 = vsub.s32 0, %v1488
  %v1490 = vrot.slane %v1485, %v1489
  %v1492 = vadd.f32 %v1469, %v1490
  %v1493 = vadd.f32 %v1470, %v1490
  %v1494 = vadd.f32 %v1471, %v1490
  %v1495 = vadd.f32 %v1472, %v1490
  %v1496 = vadd.f32 %v1473, %v1490
  %v1497 = vadd.f32 %v1474, %v1490
  %v1498 = vadd.f32 %v1475, %v1490
  %v1499 = vadd.f32 %v1476, %v1490
  %v1500 = vadd.f32 %v1477, %v1490
  %v1501 = vadd.f32 %v1478, %v1490
  %v1502 = vadd.f32 %v1479, %v1490
  %v1503 = vadd.f32 %v1480, %v1490
  %v1504 = vadd.f32 %v1481, %v1490
  %v1505 = vadd.f32 %v1482, %v1490
  %v1506 = vadd.f32 %v1483, %v1490
  %v1507 = vadd.f32 %v1484, %v1490
  %v1508 = vadd.f32 %v1492, %v35
  %v1509 = vadd.f32 %v1493, %v36
  %v1510 = vadd.f32 %v1494, %v37
  %v1511 = vadd.f32 %v1495, %v38
  %v1512 = vadd.f32 %v1496, %v39
  %v1513 = vadd.f32 %v1497, %v40
  %v1514 = vadd.f32 %v1498, %v41
  %v1515 = vadd.f32 %v1499, %v42
  %v1516 = vadd.f32 %v1500, %v43
  %v1517 = vadd.f32 %v1501, %v44
  %v1518 = vadd.f32 %v1502, %v45
  %v1519 = vadd.f32 %v1503, %v46
  %v1520 = vadd.f32 %v1504, %v47
  %v1521 = vadd.f32 %v1505, %v48
  %v1522 = vadd.f32 %v1506, %v49
  %v1523 = vadd.f32 %v1507, %v50
  %v1524 = vmax.f32 %v1508, 0.0
  %v1525 = vmax.f32 %v1509, 0.0
  %v1526 = vmax.f32 %v1510, 0.0
  %v1527 = vmax.f32 %v1511, 0.0
  %v1528 = vmax.f32 %v1512, 0.0
  %v1529 = vmax.f32 %v1513, 0.0
  %v1530 = vmax.f32 %v1514, 0.0
  %v1531 = vmax.f32 %v1515, 0.0
  %v1532 = vmax.f32 %v1516, 0.0
  %v1533 = vmax.f32 %v1517, 0.0
  %v1534 = vmax.f32 %v1518, 0.0
  %v1535 = vmax.f32 %v1519, 0.0
  %v1536 = vmax.f32 %v1520, 0.0
  %v1537 = vmax.f32 %v1521, 0.0
  %v1538 = vmax.f32 %v1522, 0.0
  %v1539 = vmax.f32 %v1523, 0.0
  %1540 = vst.msk [vmem:[%s10] sm:$0xff] %vm53, %v1524
  %1541 = vst.msk [vmem:[%s10 + $0x8] sm:$0xff] %vm53, %v1525
  %1542 = vst.msk [vmem:[%s10 + $0x10] sm:$0xff] %vm53, %v1526
  %1543 = vst.msk [vmem:[%s10 + $0x18] sm:$0xff] %vm53, %v1527
  %1544 = vst.msk [vmem:[%s10 + $0x20] sm:$0xff] %vm53, %v1528
  %1545 = vst.msk [vmem:[%s10 + $0x28] sm:$0xff] %vm53, %v1529
  %1546 = vst.msk [vmem:[%s10 + $0x30] sm:$0xff] %vm53, %v1530
  %1547 = vst.msk [vmem:[%s10 + $0x38] sm:$0xff] %vm53, %v1531
  %1548 = vst.msk [vmem:[%s10 + $0x40] sm:$0xff] %vm53, %v1532
  %1549 = vst.msk [vmem:[%s10 + $0x48] sm:$0xff] %vm53, %v1533
  %1550 = vst.msk [vmem:[%s10 + $0x50] sm:$0xff] %vm53, %v1534
  %1551 = vst.msk [vmem:[%s10 + $0x58] sm:$0xff] %vm53, %v1535
  %1552 = vst.msk [vmem:[%s10 + $0x60] sm:$0xff] %vm53, %v1536
  %1553 = vst.msk [vmem:[%s10 + $0x68] sm:$0xff] %vm53, %v1537
  %1554 = vst.msk [vmem:[%s10 + $0x70] sm:$0xff] %vm53, %v1538
  %1555 = vst.msk [vmem:[%s10 + $0x78] sm:$0xff] %vm53, %v1539
  // Predicated region
  $region42: #{tpu_custom_call.1} parent=0 // pred_check
    _
  $region43: #{tpu_custom_call.1} parent=0 // pred_check_branch
    %1557 = sbr.rel (0) target = $region45
  $region44: #{tpu_custom_call.1} parent=0 // pred_region
    _
  $region45: #{tpu_custom_call.1} parent=0 // pred_fallthru
    _
  // Predicated region
  $region46: #{tpu_custom_call.1} parent=0 // pred_check
    _
  $region47: #{tpu_custom_call.1} parent=0 // pred_check_branch
    %1559 = sbr.rel (0) target = $region49
  $region48: #{tpu_custom_call.1} parent=0 // pred_region
    _
  $region49: #{tpu_custom_call.1} parent=0 // pred_fallthru
    _

</llo_original>
